<compile_context>
chip_gen: v6e
topology: v6e:2x2x1
jax: 0.10.0
libtpu: 0.0.40
codegen_flags: <defaults>
</compile_context>

<pallas_src>
import functools
import math

import jax
import jax.numpy as jnp
import numpy as np
from jax.experimental import pallas as pl
from jax.experimental.pallas import tpu as pltpu

EPS = 1e-6


def _layernorm_kernel(ab_ref, x_ref, o_ref, *, eps: float):
    x = x_ref[...]
    n = x.shape[-1]
    # Two independent reductions -> they overlap on the XLUs (2 on v6e/v7x, 3 on v5e).
    s1 = jnp.sum(x, axis=-1, keepdims=True)
    s2 = jnp.sum(x * x, axis=-1, keepdims=True)
    mean = s1 * (1.0 / n)
    # Unbiased variance (N-1); guard the one-pass form against tiny negative rounding.
    var = jnp.maximum((s2 - n * mean * mean) * (1.0 / (n - 1)), 0.0)
    # eps is added to the STD (torch spec), then one exact reciprocal.
    inv_std = pl.reciprocal(jnp.sqrt(var) + eps, approx=False)
    alpha = ab_ref[0]   # scalar, SMEM
    bias = ab_ref[1]    # scalar, SMEM
    o_ref[...] = alpha * (x - mean) * inv_std + bias


def _pick_row_tile(n_rows: int, n_feat: int) -> int:
    """Biggest row tile that keeps one (tile, N) f32 buffer ~2 MiB (double-buffered input +
    output stay far below the default scoped-VMEM limit on every generation).  Multiple of 8
    (sublane) unless the whole array fits in a single step (collapsed path)."""
    budget_rows = max(8, (2 * 1024 * 1024) // (4 * n_feat))
    if n_rows <= budget_rows:
        return n_rows                      # single grid step: no per-step pipeline overhead
    return max(8, (budget_rows // 8) * 8)


def layernorm(x: jax.Array, alpha_bias: jax.Array, *, eps: float = EPS) -> jax.Array:
    """LayerNorm over the last dim. alpha_bias is a (2,) array = [alpha, bias] (packed once)."""
    orig_shape = x.shape
    n_feat = orig_shape[-1]
    n_rows = math.prod(orig_shape[:-1]) if len(orig_shape) > 1 else 1
    x2 = x.reshape(n_rows, n_feat).astype(jnp.float32)   # wrapper-side layout plumbing only

    tile_rows = _pick_row_tile(n_rows, n_feat)
    grid = (pl.cdiv(n_rows, tile_rows),)

    # TODO(synk): for non-lane-dense feature dims at realistic sizes, pad N up to a multiple
    # of 128 to get unmasked output stores; at the demo sizes the masked vst is negligible.
    out = pl.pallas_call(
        functools.partial(_layernorm_kernel, eps=eps),
        out_shape=jax.ShapeDtypeStruct((n_rows, n_feat), jnp.float32),
        grid=grid,
        in_specs=[
            pl.BlockSpec(memory_space=pltpu.MemorySpace.SMEM),      # (alpha, bias) scalars
            pl.BlockSpec((tile_rows, n_feat), lambda i: (i, 0)),    # x row-tile, full last dim
        ],
        out_specs=pl.BlockSpec((tile_rows, n_feat), lambda i: (i, 0)),
        compiler_params=pltpu.CompilerParams(dimension_semantics=("parallel",)),
        cost_estimate=pl.CostEstimate(
            flops=10 * n_rows * n_feat,
            transcendentals=2 * n_rows,
            bytes_accessed=2 * n_rows * n_feat * 4,
        ),
    )(alpha_bias.astype(jnp.float32), x2)
    return out.reshape(orig_shape)


def reference(x, alpha, bias, eps=EPS):
    """Pure-JAX mirror of the PyTorch module (unbiased std, eps on std, scalar alpha/bias)."""
    mean = x.mean(-1, keepdims=True)
    std = jnp.sqrt(jnp.sum((x - mean) ** 2, axis=-1, keepdims=True) / (x.shape[-1] - 1))
    return alpha * (x - mean) / (std + eps) + bias


if __name__ == "__main__":
    key = jax.random.PRNGKey(0)
    k1, k2 = jax.random.split(key)

    # Learnable scalars (module initializes to 1 and 0); use non-trivial values so the
    # affine path is actually exercised.  Packed once into a (2,) SMEM-resident array.
    alpha = jnp.float32(1.25)
    bias = jnp.float32(-0.5)
    ab = jnp.stack([alpha, bias])

    # Primary case: lane-dense last dim (multiple of 128) per the perf feedback.
    x = jax.random.normal(k1, (2, 8, 128), jnp.float32)
    out = jax.block_until_ready(layernorm(x, ab))
    ref = reference(x, alpha, bias)
    np.testing.assert_allclose(np.asarray(out), np.asarray(ref), rtol=1e-4, atol=1e-5)

    # Secondary case: non-lane-dense feature dim / odd row count (full-block collapsed path).
    x2 = jax.random.normal(k2, (4, 6, 32), jnp.float32)
    out2 = jax.block_until_ready(layernorm(x2, ab))
    ref2 = reference(x2, alpha, bias)
    np.testing.assert_allclose(np.asarray(out2), np.asarray(ref2), rtol=1e-4, atol=1e-5)

    print("KERNEL_OK")
</pallas_src>

<mosaic_0001>
module attributes {stable_mosaic.version = 11 : i64} {
  func.func @_layernorm_kernel(%arg0: i32, %arg1: memref<2xf32, #tpu.memory_space<smem>>, %arg2: memref<16x128xf32, #tpu.memory_space<vmem>>, %arg3: memref<16x128xf32, #tpu.memory_space<vmem>>) attributes {dimension_semantics = [#tpu.dimension_semantics<parallel>], iteration_bounds = array<i64: 1>, scalar_prefetch = 0 : i64, scratch_operands = 0 : i64, tpu.core_type = #tpu.core_type<tc>, window_params = [{transform_indices = @transform_0, window_bounds = array<i64: 2>}, {transform_indices = @transform_1, window_bounds = array<i64: 16, 128>}, {transform_indices = @transform_2, window_bounds = array<i64: 16, 128>}]} {
    %c0 = arith.constant 0 : index
    %c0_0 = arith.constant 0 : index
    %0 = vector.load %arg2[%c0, %c0_0] : memref<16x128xf32, #tpu.memory_space<vmem>>, vector<16x128xf32>
    %cst = arith.constant dense<0.000000e+00> : vector<16xf32>
    %1 = vector.multi_reduction <add>, %0, %cst [1] : vector<16x128xf32> to vector<16xf32>
    %2 = vector.shape_cast %1 : vector<16xf32> to vector<16x1xf32>
    %3 = arith.mulf %0, %0 : vector<16x128xf32>
    %cst_1 = arith.constant dense<0.000000e+00> : vector<16xf32>
    %4 = vector.multi_reduction <add>, %3, %cst_1 [1] : vector<16x128xf32> to vector<16xf32>
    %5 = vector.shape_cast %4 : vector<16xf32> to vector<16x1xf32>
    %cst_2 = arith.constant 7.812500e-03 : f32
    %6 = vector.broadcast %cst_2 : f32 to vector<16x1xf32>
    %7 = arith.mulf %2, %6 : vector<16x1xf32>
    %cst_3 = arith.constant 1.280000e+02 : f32
    %8 = vector.broadcast %cst_3 : f32 to vector<16x1xf32>
    %9 = arith.mulf %8, %7 : vector<16x1xf32>
    %10 = arith.mulf %9, %7 : vector<16x1xf32>
    %11 = arith.subf %5, %10 : vector<16x1xf32>
    %cst_4 = arith.constant 0.00787401571 : f32
    %12 = vector.broadcast %cst_4 : f32 to vector<16x1xf32>
    %13 = arith.mulf %11, %12 : vector<16x1xf32>
    %cst_5 = arith.constant 0.000000e+00 : f32
    %14 = vector.broadcast %cst_5 : f32 to vector<16x1xf32>
    %15 = arith.maximumf %13, %14 : vector<16x1xf32>
    %16 = math.sqrt %15 : vector<16x1xf32>
    %cst_6 = arith.constant 9.99999997E-7 : f32
    %17 = vector.broadcast %cst_6 : f32 to vector<16x1xf32>
    %18 = arith.addf %16, %17 : vector<16x1xf32>
    %19 = tpu.reciprocal %18 : vector<16x1xf32> -> vector<16x1xf32>
    %c0_7 = arith.constant 0 : index
    %20 = memref.load %arg1[%c0_7] : memref<2xf32, #tpu.memory_space<smem>>
    %c1 = arith.constant 1 : index
    %21 = memref.load %arg1[%c1] : memref<2xf32, #tpu.memory_space<smem>>
    %22 = vector.broadcast %7 : vector<16x1xf32> to vector<16x128xf32>
    %23 = arith.subf %0, %22 : vector<16x128xf32>
    %24 = vector.broadcast %20 : f32 to vector<16x128xf32>
    %25 = arith.mulf %24, %23 : vector<16x128xf32>
    %26 = vector.broadcast %19 : vector<16x1xf32> to vector<16x128xf32>
    %27 = arith.mulf %25, %26 : vector<16x128xf32>
    %28 = vector.broadcast %21 : f32 to vector<16x128xf32>
    %29 = arith.addf %27, %28 : vector<16x128xf32>
    %c0_8 = arith.constant 0 : index
    %c0_9 = arith.constant 0 : index
    %30 = vector.load %arg3[%c0_8, %c0_9] : memref<16x128xf32, #tpu.memory_space<vmem>>, vector<16x128xf32>
    tpu.vector_store %arg3[%c0_8, %c0_9], %29 {strides = array<i32>} : memref<16x128xf32, #tpu.memory_space<vmem>>, vector<16x128xf32>,
    return
  }
  func.func @transform_0(%arg0: i32) -> i32 {
    %c0_i32 = arith.constant 0 : i32
    %c0_i32_0 = arith.constant 0 : i32
    return %c0_i32 : i32
  }
  func.func @transform_1(%arg0: i32) -> (i32, i32) {
    %c0_i32 = arith.constant 0 : i32
    %c0_i32_0 = arith.constant 0 : i32
    return %arg0, %c0_i32 : i32, i32
  }
  func.func @transform_2(%arg0: i32) -> (i32, i32) {
    %c0_i32 = arith.constant 0 : i32
    %c0_i32_0 = arith.constant 0 : i32
    return %arg0, %c0_i32 : i32, i32
  }
}

</mosaic_0001>

<llo_original>
// kernel: tpu_custom_call.1
$region0: #{tpu_custom_call.1}
  #allocation0 [shape = 'u32[]', space=smem, size = 0x4, offset = 0x4, fixed_abs, tag = 'smem constant byte address 0x4 - core index']
  #allocation1 [shape = 'u32[144,128]{1,0:T(1,128)}', space=vmem, size = 0x12000, scoped, tag = 'internal scratch']
  %s0 = inlined_call_operand.hbm [shape: f32[2], index: 0, kind: input, shape index: {}]
  %s1 = inlined_call_operand.hbm [shape: f32[16,128], index: 1, kind: input, shape index: {}]
  %s2 = inlined_call_operand.hbm [shape: f32[16,128], index: 2, kind: output, shape index: {}]
  %s3 = sld [smem:[#allocation0]]
  $region26: #{tpu_custom_call.1} parent=0
    _
  %s5 = ssub.s32 1, %s3
  %s6 = scalar_select 0, %s5, %s3
  $region1: #{tpu_custom_call.1} parent=0
    #allocation2 [shape = 'u8[512]{0}', space=smem, size = 0x200, scoped, tag = 'input window, operand 0, single buffered']
    #allocation3 [shape = 's32[1]{0}', space=sflag, size = 0x4, scoped, tag = 'scoped memory for tpu_custom_call.1']
    #allocation4 [shape = 's32[1]{0}', space=sflag, size = 0x4, scoped, tag = 'scoped memory for tpu_custom_call.1']
    #allocation5 [shape = 's32[1]{0}', space=sflag, size = 0x4, scoped, tag = 'scoped memory for tpu_custom_call.1']
    #allocation6 [shape = 'u8[8192]{0}', space=vmem, size = 0x2000, scoped, tag = 'input window, operand 1, single buffered']
    #allocation7 [shape = 'u8[8192]{0}', space=vmem, size = 0x2000, scoped, tag = 'output window, operand 0, single buffered']
    %7 = vsyncpa [#allocation5], 0
    %8 = vsyncpa [#allocation3], 0
    %9 = vsyncpa [#allocation4], 0
    // Predicated region
    $region2: #{tpu_custom_call.1} parent=1 // pred_check
      _
    $region3: #{tpu_custom_call.1} parent=1 // pred_check_branch
      %11 = sbr.rel (0) target = $region5
    $region4: #{tpu_custom_call.1} parent=1 // pred_region
      %s13 = ssub.s32 16, 16
      %14 = vsyncadd [#allocation5], %s13
      %17 = dma.hbm_to_smem %s0, 16, [#allocation2], [#allocation5]
    $region5: #{tpu_custom_call.1} parent=1 // pred_fallthru
      _
    // Predicated region
    $region6: #{tpu_custom_call.1} parent=1 // pred_check
      _
    $region7: #{tpu_custom_call.1} parent=1 // pred_check_branch
      %19 = sbr.rel (0) target = $region9
    $region8: #{tpu_custom_call.1} parent=1 // pred_region
      %s21 = ssub.s32 256, 256
      %22 = vsyncadd [#allocation3], %s21
      %s23 = sshll.u32 [#allocation6], 4
      %s24 = int_to_ptr.vmem [resolvable:$true] %s23
      %29 = dma.hbm_to_vmem [thread:$0]  %s1, 256, %s24, [#allocation3], 128, 128, 8
    $region9: #{tpu_custom_call.1} parent=1 // pred_fallthru
      _
    // Predicated region
    $region10: #{tpu_custom_call.1} parent=1 // pred_check
      _
    $region11: #{tpu_custom_call.1} parent=1 // pred_check_branch
      %31 = sbr.rel (0) target = $region13
    $region12: #{tpu_custom_call.1} parent=1 // pred_region
      %32 = dma.done [#allocation5], 16
    $region13: #{tpu_custom_call.1} parent=1 // pred_fallthru
      _
    // Predicated region
    $region14: #{tpu_custom_call.1} parent=1 // pred_check
      _
    $region15: #{tpu_custom_call.1} parent=1 // pred_check_branch
      %34 = sbr.rel (0) target = $region17
    $region16: #{tpu_custom_call.1} parent=1 // pred_region
      %35 = dma.done [#allocation3], 256
    $region17: #{tpu_custom_call.1} parent=1 // pred_fallthru
      _
    %36 = sfence
    %v37 = vld [vmem:[#allocation6] sm:$0xff]
    %v38 = vld [vmem:[#allocation6 + $0x8] sm:$0xff]
    %39 = vadd.xlane.f32.xlu0 %v37
    %v40 = vpop.xlane.xlu0 %39
    %41 = vadd.xlane.f32.xlu0 %v38
    %v42 = vpop.xlane.xlu0 %41
    %v43 = vmul.f32 %v37, %v37
    %v44 = vmul.f32 %v38, %v38
    %45 = vadd.xlane.f32.xlu0 %v43
    %v46 = vpop.xlane.xlu0 %45
    %47 = vadd.xlane.f32.xlu0 %v44
    %v48 = vpop.xlane.xlu0 %47
    %v49 = vmul.f32 %v40, 0.0078125
    %v50 = vmul.f32 %v42, 0.0078125
    %v51 = vmul.f32 %v49, 128.0
    %v52 = vmul.f32 %v50, 128.0
    %v53 = vmul.f32 %v51, %v49
    %v54 = vmul.f32 %v52, %v50
    %v55 = vsub.f32 %v46, %v53
    %v56 = vsub.f32 %v48, %v54
    %v57 = vmul.f32 %v55, 0.007874016
    %v58 = vmul.f32 %v56, 0.007874016
    %v59 = vmax.f32 %v57, 0.0
    %v60 = vmax.f32 %v58, 0.0
    %v61 = vrsqrt.pop %v59
    %v62 = vmul.f32 %v59, %v61
    %vm63 = vcmp.eq.f32.partialorder %v59, inf
    %v64 = vsel %vm63, %v59, %v62
    %vm65 = vcmp.eq.f32.partialorder %v59, 0.0
    %v66 = vand.u32 %v59, 2147483648
    %v67 = vsel %vm65, %v66, %v64
    %v68 = vrsqrt.pop %v60
    %v69 = vmul.f32 %v60, %v68
    %vm70 = vcmp.eq.f32.partialorder %v60, inf
    %v71 = vsel %vm70, %v60, %v69
    %vm72 = vcmp.eq.f32.partialorder %v60, 0.0
    %v73 = vand.u32 %v60, 2147483648
    %v74 = vsel %vm72, %v73, %v71
    %v75 = vadd.f32 %v67, 1e-06
    %v76 = vadd.f32 %v74, 1e-06
    %v77 = vrcp.pop %v75
    %v78 = vrcp.pop %v76
    %s79 = sld [smem:[#allocation2]]
    %s80 = sld [smem:[#allocation2 + $0x1]]
    %v81 = vsub.f32 %v37, %v49
    %v82 = vsub.f32 %v38, %v50
    %v83 = vstv %s79
    %v84 = vmul.f32 %v83, %v81
    %v85 = vmul.f32 %v83, %v82
    %v86 = vmul.f32 %v84, %v77
    %v87 = vmul.f32 %v85, %v78
    %v88 = vstv %s80
    %v89 = vadd.f32 %v86, %v88
    %v90 = vadd.f32 %v87, %v88
    %91 = vst [vmem:[#allocation7] sm:$0xff] %v89
    %92 = vst [vmem:[#allocation7 + $0x8] sm:$0xff] %v90
    // Predicated region
    $region18: #{tpu_custom_call.1} parent=1 // pred_check
      _
    $region19: #{tpu_custom_call.1} parent=1 // pred_check_branch
      %94 = sbr.rel (0) target = $region21
    $region20: #{tpu_custom_call.1} parent=1 // pred_region
      %s96 = ssub.s32 256, 256
      %97 = vsyncadd [#allocation4], %s96
      %s98 = sshll.u32 [#allocation7], 4
      %s99 = int_to_ptr.vmem [resolvable:$true] %s98
      %104 = dma.vmem_to_hbm [thread:$0]  %s99, 256, %s2, [#allocation4], 128, 128, 8
    $region21: #{tpu_custom_call.1} parent=1 // pred_fallthru
      _
    // Predicated region
    $region22: #{tpu_custom_call.1} parent=1 // pred_check
      _
    $region23: #{tpu_custom_call.1} parent=1 // pred_check_branch
      %106 = sbr.rel (0) target = $region25
    $region24: #{tpu_custom_call.1} parent=1 // pred_region
      %107 = dma.done [#allocation4], 256
    $region25: #{tpu_custom_call.1} parent=1 // pred_fallthru
      _
    %108 = vsyncpa [#allocation3], 1
    %109 = vsyncpa [#allocation4], 1
    %110 = vsyncpa [#allocation5], 1

</llo_original>
